<compile_context>
chip_gen: v5e
topology: v5e:2x2
jax: 0.10.0
libtpu: 0.0.40
codegen_flags: <defaults>
</compile_context>

<pallas_src>
import functools

import jax
import jax.numpy as jnp
from jax import lax
from jax.experimental import pallas as pl
from jax.experimental.pallas import tpu as pltpu


def _round_up(n: int, m: int) -> int:
    return ((n + m - 1) // m) * m


def _hyperbolic_activation_kernel(x_ref, o_ref, *, activation):
    """One (tile_b, F) batch tile: keep lane 0 (cartan), activate lanes 1.. (fiber)."""
    x = x_ref[...]                                          # (TB, F) lane-dense tile
    a = activation(x)                                       # cheap VPU/EUP work, whole tile
    lane = lax.broadcasted_iota(jnp.int32, x.shape, dimension=1)
    # cartan component (lane 0) passes through untouched; fiber gets the activation.
    o_ref[...] = jnp.where(lane == 0, x, a)


def hyperbolic_activation(x, activation=jax.nn.relu, *, tile_b=512):
    """Pallas wrapper.

    x: (..., F) float array; the last axis is (1 cartan coord + F-1 fiber coords).
    activation: elementwise JAX callable (stand-in for the torch activation instance).
    """
    orig_shape = x.shape
    feat = orig_shape[-1]
    x2 = x.reshape(-1, feat)                                # flatten leading dims (no copy)
    batch = x2.shape[0]

    # Largest useful tile: don't exceed the (sublane-rounded) batch, keep a multiple of 8
    # so the (8, 128) block constraint is satisfied (last dim is the full array dim).
    tile_b = max(8, min(tile_b, _round_up(batch, 8)))
    grid = (pl.cdiv(batch, tile_b),)

    kernel = functools.partial(_hyperbolic_activation_kernel, activation=activation)
    out = pl.pallas_call(
        kernel,
        out_shape=jax.ShapeDtypeStruct((batch, feat), x2.dtype),
        grid=grid,
        in_specs=[pl.BlockSpec((tile_b, feat), lambda i: (i, 0))],
        out_specs=pl.BlockSpec((tile_b, feat), lambda i: (i, 0)),
        compiler_params=pltpu.CompilerParams(
            dimension_semantics=("parallel",)),
    )(x2)
    return out.reshape(orig_shape)


def hyperbolic_activation_ref(x, activation=jax.nn.relu):
    """Pure-JAX reference: cat([cartan(x), activation(fiber(x))], axis=-1)."""
    return jnp.concatenate([x[..., :1], activation(x[..., 1:])], axis=-1)


if __name__ == "__main__":
    key = jax.random.PRNGKey(0)
    k_xs = jax.random.split(key, 1)[0]

    B = 16            # batch
    size_in = 33      # 1 cartan (time) coordinate + 32 fiber (spatial) coordinates
    D = size_in - 1

    # Build valid Lorentz-model points (x0 = sqrt(1 + ||x_space||^2)); the activation
    # module itself is agnostic to this, it just makes the inputs geometrically sensible.
    xs = jax.random.normal(k_xs, (B, D), dtype=jnp.float32)
    x0 = jnp.sqrt(1.0 + jnp.sum(xs * xs, axis=1, keepdims=True))
    x = jnp.concatenate([x0, xs], axis=1)                   # (B, size_in)

    ok = True
    for act_name, act in (("relu", jax.nn.relu), ("tanh", jnp.tanh)):
        # tile_b=8 here only so the tiny demo exercises a multi-step grid (grid=2);
        # the production default is tile_b=512.
        out = hyperbolic_activation(x, act, tile_b=8)
        out = jax.block_until_ready(out)
        ref = hyperbolic_activation_ref(x, act)
        assert out.shape == x.shape, (act_name, out.shape)
        assert jnp.allclose(out, ref, atol=1e-6, rtol=1e-6), (act_name, out, ref)
        ok = ok and bool(jnp.all(jnp.isfinite(out)))

    assert ok
    print("KERNEL_OK")
</pallas_src>

<mosaic_0001>
module attributes {stable_mosaic.version = 11 : i64} {
  func.func @_hyperbolic_activation_kernel(%arg0: i32, %arg1: memref<8x33xf32, #tpu.memory_space<vmem>>, %arg2: memref<8x33xf32, #tpu.memory_space<vmem>>) attributes {dimension_semantics = [#tpu.dimension_semantics<parallel>], iteration_bounds = array<i64: 2>, scalar_prefetch = 0 : i64, scratch_operands = 0 : i64, tpu.core_type = #tpu.core_type<tc>, window_params = [{transform_indices = @transform_0, window_bounds = array<i64: 8, 33>}, {transform_indices = @transform_1, window_bounds = array<i64: 8, 33>}]} {
    %c0 = arith.constant 0 : index
    %c0_0 = arith.constant 0 : index
    %0 = vector.load %arg1[%c0, %c0_0] : memref<8x33xf32, #tpu.memory_space<vmem>>, vector<8x33xf32>
    %cst = arith.constant 0.000000e+00 : f32
    %1 = vector.broadcast %cst : f32 to vector<8x33xf32>
    %2 = arith.maximumf %0, %1 : vector<8x33xf32>
    %3 = tpu.iota {dimensions = array<i32: 1>} : vector<8x33xi32>
    %c0_i32 = arith.constant 0 : i32
    %4 = vector.broadcast %c0_i32 : i32 to vector<8x33xi32>
    %5 = arith.cmpi eq, %3, %4 : vector<8x33xi32>
    %6 = arith.select %5, %0, %2 : vector<8x33xi1>, vector<8x33xf32>
    %c0_1 = arith.constant 0 : index
    %c0_2 = arith.constant 0 : index
    %7 = vector.load %arg2[%c0_1, %c0_2] : memref<8x33xf32, #tpu.memory_space<vmem>>, vector<8x33xf32>
    tpu.vector_store %arg2[%c0_1, %c0_2], %6 {strides = array<i32>} : memref<8x33xf32, #tpu.memory_space<vmem>>, vector<8x33xf32>,
    return
  }
  func.func @transform_0(%arg0: i32) -> (i32, i32) {
    %c0_i32 = arith.constant 0 : i32
    %c0_i32_0 = arith.constant 0 : i32
    return %arg0, %c0_i32 : i32, i32
  }
  func.func @transform_1(%arg0: i32) -> (i32, i32) {
    %c0_i32 = arith.constant 0 : i32
    %c0_i32_0 = arith.constant 0 : i32
    return %arg0, %c0_i32 : i32, i32
  }
}

</mosaic_0001>

<llo_original>
// kernel: tpu_custom_call.1
$region0: #{tpu_custom_call.1}
  #allocation0 [shape = 'u32[]', space=smem, size = 0x4, offset = 0x4, fixed_abs, tag = 'smem constant byte address 0x4 - core index']
  #allocation1 [shape = 'u32[72,128]{1,0:T(1,128)}', space=vmem, size = 0x9000, scoped, tag = 'internal scratch']
  %s0 = inlined_call_operand.hbm [shape: f32[16,33], index: 0, kind: input, shape index: {}]
  %s1 = inlined_call_operand.hbm [shape: f32[16,33], index: 1, kind: output, shape index: {}]
  %s2 = sld [smem:[#allocation0]]
  $region41: #{tpu_custom_call.1} parent=0
    _
  %s4 = ssub.s32 1, %s2
  %s5 = scalar_select 0, %s4, %s2
  $region1: #{tpu_custom_call.1} parent=0
    #allocation2 [shape = 'u8[8192]{0}', space=vmem, size = 0x2000, scoped, tag = 'input window, operand 0']
    #allocation3 [shape = 's32[2]{0}', space=sflag, size = 0x8, scoped, tag = 'scoped memory for tpu_custom_call.1']
    #allocation4 [shape = 's32[2]{0}', space=sflag, size = 0x8, scoped, tag = 'scoped memory for tpu_custom_call.1']
    #allocation5 [shape = 'u8[8192]{0}', space=vmem, size = 0x2000, scoped, tag = 'output window, operand 0']
    %6 = vsyncpa [#allocation3], 0
    %s7 = scalar_lea.sflag [#allocation3], 1
    %8 = vsyncpa %s7, 0
    %9 = vsyncpa [#allocation4], 0
    %s10 = scalar_lea.sflag [#allocation4], 1
    %11 = vsyncpa %s10, 0
    loop: start=0, step=1, limit=4
    $region2: #{tpu_custom_call.1} parent=1 // loop_pre_header
      _
    $region3: #{tpu_custom_call.1} parent=1 // loop_header
      %s13 = sphi 0, %s17
      %p14 = scmp.ge.s32.totalorder %s13, 4
      %s23 = sphi 0, %s25
      %s26 = sphi 0, %s23
      %s27 = sphi 0, %s26
      %s43 = sphi 0, %s27
      %s49 = sphi 0, %s51
      %s52 = sphi 0, %s49
      %s53 = sphi 0, %s52
      %s69 = sphi 0, %s53
    $region4: #{tpu_custom_call.1} parent=1 // loop_header_branch
      %16 = sbr.rel (%p14) target = $region8
    $region5: #{tpu_custom_call.1} parent=1 // loop_body
      %s18 = ssub.s32 %s13, 1
      %s19 = ssub.s32 %s13, 2
      %s20 = sadd.s32 %s13, 1
      %s21 = ssub.s32 %s13, %s20
      %p22 = scmp.eq.s32.totalorder %s21, 0
      %s24 = sadd.s32 %s23, 1
      %s25 = scalar_select %p22, %s23, %s24
      %p28 = pneg %p22
      %p29 = scmp.eq.s32.totalorder %s13, 1
      %p30 = por %p28, %p29
      %p31 = scmp.ne.s32.totalorder %s23, %s26
      %p32 = scmp.eq.s32.totalorder %s13, 0
      %p33 = por %p31, %p32
      %p34 = scmp.ne.s32.totalorder %s23, %s26
      %p35 = scmp.eq.s32.totalorder %s18, 1
      %p36 = por %p34, %p35
      %p37 = scmp.ne.s32.totalorder %s26, %s27
      %p38 = scmp.eq.s32.totalorder %s18, 0
      %p39 = por %p37, %p38
      %p40 = scmp.ne.s32.totalorder %s26, %s27
      %p41 = scmp.eq.s32.totalorder %s19, 1
      %p42 = por %p40, %p41
      %p44 = scmp.ne.s32.totalorder %s27, %s43
      %p45 = scmp.eq.s32.totalorder %s19, 0
      %p46 = por %p44, %p45
      %s47 = ssub.s32 %s13, %s20
      %p48 = scmp.eq.s32.totalorder %s47, 0
      %s50 = sadd.s32 %s49, 1
      %s51 = scalar_select %p48, %s49, %s50
      %p54 = pneg %p48
      %p55 = scmp.eq.s32.totalorder %s13, 1
      %p56 = por %p54, %p55
      %p57 = scmp.ne.s32.totalorder %s49, %s52
      %p58 = scmp.eq.s32.totalorder %s13, 0
      %p59 = por %p57, %p58
      %p60 = scmp.ne.s32.totalorder %s49, %s52
      %p61 = scmp.eq.s32.totalorder %s18, 1
      %p62 = por %p60, %p61
      %p63 = scmp.ne.s32.totalorder %s52, %s53
      %p64 = scmp.eq.s32.totalorder %s18, 0
      %p65 = por %p63, %p64
      %p66 = scmp.ne.s32.totalorder %s52, %s53
      %p67 = scmp.eq.s32.totalorder %s19, 1
      %p68 = por %p66, %p67
      %p70 = scmp.ne.s32.totalorder %s53, %s69
      %p71 = scmp.eq.s32.totalorder %s19, 0
      %p72 = por %p70, %p71
      %p73 = scmp.le.s32.totalorder 1, %s13
      %p74 = scmp.lt.s32.totalorder %s13, 3
      %p75 = pnand %p73, %p74
      %p76 = pneg %p75
      // Predicated region
      $region9: #{tpu_custom_call.1} parent=5 // pred_check
        _
      $region10: #{tpu_custom_call.1} parent=5 // pred_check_branch
        %78 = sbr.rel (%p75) target = $region12
      $region11: #{tpu_custom_call.1} parent=5 // pred_region
        %s79 = ssub.s32 %s13, 1
      $region12: #{tpu_custom_call.1} parent=5 // pred_fallthru
        _
      %p80 = scmp.lt.s32.totalorder %s13, 2
      // Predicated region
      $region13: #{tpu_custom_call.1} parent=5 // pred_check
        %p81 = pneg %p80
      $region14: #{tpu_custom_call.1} parent=5 // pred_check_branch
        %83 = sbr.rel (%p81) target = $region16
      $region15: #{tpu_custom_call.1} parent=5 // pred_region
        // Predicated region
        $region17: #{tpu_custom_call.1} parent=15 // pred_check
          %p84 = pneg %p33
        $region18: #{tpu_custom_call.1} parent=15 // pred_check_branch
          %86 = sbr.rel (%p84) target = $region20
        $region19: #{tpu_custom_call.1} parent=15 // pred_region
          %s87 = sand.u32 %s23, 1
          %s88 = scalar_lea.sflag [#allocation3], %s87
          %s89 = sand.u32 %s23, 1
          %s90 = smul.addr %s89, 8
          %s91 = scalar_lea.vmem [#allocation2], %s90
          %93 = vsyncadd %s88, 0
          %s94 = smul.addr %s13, 8
          %s95 = scalar_lea.hbm %s0, %s94
          %s97 = sshll.u32 %s95, 4
          %s98 = int_to_ptr.hbm [resolvable:$true] %s97
          %s99 = sshll.u32 %s91, 4
          %s100 = int_to_ptr.vmem [resolvable:$true] %s99
          %102 = dma.hbm_to_vmem [thread:$0]  %s98, 128, %s100, %s88
        $region20: #{tpu_custom_call.1} parent=15 // pred_fallthru
          _
      $region16: #{tpu_custom_call.1} parent=5 // pred_fallthru
        _
      %p103 = scmp.le.s32.totalorder 1, %s13
      %p104 = scmp.lt.s32.totalorder %s13, 3
      %p105 = pnand %p103, %p104
      %p106 = pneg %p105
      // Predicated region
      $region21: #{tpu_custom_call.1} parent=5 // pred_check
        _
      $region22: #{tpu_custom_call.1} parent=5 // pred_check_branch
        %108 = sbr.rel (%p105) target = $region24
      $region23: #{tpu_custom_call.1} parent=5 // pred_region
        %s109 = ssub.s32 %s13, 1
        %s110 = sand.u32 %s26, 1
        %s111 = scalar_lea.sflag [#allocation3], %s110
        %s112 = sand.u32 %s26, 1
        %s113 = smul.addr %s112, 8
        %s114 = scalar_lea.vmem [#allocation2], %s113
        // Predicated region
        $region25: #{tpu_custom_call.1} parent=23 // pred_check
          %p115 = pneg %p39
        $region26: #{tpu_custom_call.1} parent=23 // pred_check_branch
          %117 = sbr.rel (%p115) target = $region28
        $region27: #{tpu_custom_call.1} parent=23 // pred_region
          %119 = dma.done %s111, 128
        $region28: #{tpu_custom_call.1} parent=23 // pred_fallthru
          _
        %s120 = sand.u32 %s26, 1
        %s121 = scalar_lea.sflag [#allocation3], %s120
        %s122 = sand.u32 %s26, 1
        %s123 = smul.addr %s122, 8
        %s124 = scalar_lea.vmem [#allocation2], %s123
        %p125 = pneg %p39
        %p126 = pneg %p36
        %p127 = pneg %p65
        %p128 = pneg %p62
        %s129 = sand.u32 %s52, 1
        %s130 = scalar_lea.sflag [#allocation4], %s129
        %s131 = sand.u32 %s52, 1
        %s132 = smul.addr %s131, 8
        %s133 = scalar_lea.vmem [#allocation5], %s132
        %v134 = vld [vmem:[%s114] sm:$0xff]
        %v135 = vmax.f32 %v134, 0.0
        %v136 = vlaneseq
        %v137 = vand.u32 %v136, 127
        %vm138 = vcmp.eq.s32.totalorder %v137, 0
        %v139 = vsel %vm138, %v134, %v135
        %vm140 = vcmask 269312
        %141 = vst.msk [vmem:[%s133] sm:$0xff] %vm140, %v139
        %s142 = sand.u32 %s52, 1
        %s143 = scalar_lea.sflag [#allocation4], %s142
        %s144 = sand.u32 %s52, 1
        %s145 = smul.addr %s144, 8
        %s146 = scalar_lea.vmem [#allocation5], %s145
        // Predicated region
        $region29: #{tpu_custom_call.1} parent=23 // pred_check
          %p147 = pneg %p62
        $region30: #{tpu_custom_call.1} parent=23 // pred_check_branch
          %149 = sbr.rel (%p147) target = $region32
        $region31: #{tpu_custom_call.1} parent=23 // pred_region
          %151 = vsyncadd %s143, 0
          %s152 = smul.addr %s18, 8
          %s153 = scalar_lea.hbm %s1, %s152
          %s155 = sshll.u32 %s146, 4
          %s156 = int_to_ptr.vmem [resolvable:$true] %s155
          %s157 = sshll.u32 %s153, 4
          %s158 = int_to_ptr.hbm [resolvable:$true] %s157
          %160 = dma.vmem_to_hbm [thread:$0]  %s156, 128, %s158, %s143
        $region32: #{tpu_custom_call.1} parent=23 // pred_fallthru
          _
      $region24: #{tpu_custom_call.1} parent=5 // pred_fallthru
        _
      %p161 = scmp.le.s32.totalorder 2, %s13
      // Predicated region
      $region33: #{tpu_custom_call.1} parent=5 // pred_check
        %p162 = pneg %p161
      $region34: #{tpu_custom_call.1} parent=5 // pred_check_branch
        %164 = sbr.rel (%p162) target = $region36
      $region35: #{tpu_custom_call.1} parent=5 // pred_region
        %s165 = ssub.s32 %s13, 2
        // Predicated region
        $region37: #{tpu_custom_call.1} parent=35 // pred_check
          %p166 = pneg %p68
        $region38: #{tpu_custom_call.1} parent=35 // pred_check_branch
          %168 = sbr.rel (%p166) target = $region40
        $region39: #{tpu_custom_call.1} parent=35 // pred_region
          %s169 = sand.u32 %s53, 1
          %s170 = scalar_lea.sflag [#allocation4], %s169
          %s171 = sand.u32 %s53, 1
          %s172 = smul.addr %s171, 8
          %s173 = scalar_lea.vmem [#allocation5], %s172
          %175 = dma.done %s170, 128
        $region40: #{tpu_custom_call.1} parent=35 // pred_fallthru
          _
      $region36: #{tpu_custom_call.1} parent=5 // pred_fallthru
        _
    $region6: #{tpu_custom_call.1} parent=1 // loop_footer
      %s17 = sadd.s32 1, %s13
    $region7: #{tpu_custom_call.1} parent=1 // loop_footer_branch
      %12 = sbr.rel target = $region3
    $region8: #{tpu_custom_call.1} parent=1 // loop_exit
      _
    %176 = vsyncpa [#allocation3], 1
    %s177 = scalar_lea.sflag [#allocation3], 1
    %178 = vsyncpa %s177, 1
    %179 = vsyncpa [#allocation4], 1
    %s180 = scalar_lea.sflag [#allocation4], 1
    %181 = vsyncpa %s180, 1

</llo_original>
